<compile_context>
chip_gen: v7x
topology: tpu7x:2x2x1
jax: 0.10.0
libtpu: 0.0.40
codegen_flags: <defaults>
</compile_context>

<pallas_src>
import jax
import jax.numpy as jnp
from jax.experimental import pallas as pl
from jax.experimental.pallas import tpu as pltpu

LANE = 128
SUB = 8


def _round_up(x, m):
    return (x + m - 1) // m * m


def _pad_axis(x, axis, target):
    pad = target - x.shape[axis]
    if pad <= 0:
        return x
    widths = [(0, 0)] * x.ndim
    widths[axis] = (0, pad)
    return jnp.pad(x, widths)


# ---------------------------------------------------------------------------
# Kernel 1: ScaledDotProductAttention over per-day document embeddings.
# Grid is over blocks of days ("parallel"), lane-padded text dim (Tp=128).
# ---------------------------------------------------------------------------
def _attn_kernel(x_ref, wqkv_ref, out_ref):
    bB, L, E = x_ref.shape
    Tp = out_ref.shape[-1]

    xf = x_ref[...].reshape(bB * L, E)                                       # bf16
    qkv = jnp.dot(xf, wqkv_ref[...], preferred_element_type=jnp.float32)    # (bB*L, 3Tp)
    # 128-lane-aligned static slices (1/temperature already folded into wq).
    q = qkv[:, 0 * Tp:1 * Tp].reshape(bB, L, Tp)
    k = qkv[:, 1 * Tp:2 * Tp].reshape(bB, L, Tp)
    v = qkv[:, 2 * Tp:3 * Tp].reshape(bB, L, Tp)

    scores = jnp.einsum('bqd,bkd->bqk',
                        q.astype(jnp.bfloat16), k.astype(jnp.bfloat16),
                        preferred_element_type=jnp.float32)                  # (bB, L, L)
    m = jnp.max(scores, axis=-1, keepdims=True)
    e = jnp.exp(scores - m)
    attn = e / jnp.sum(e, axis=-1, keepdims=True)                            # exact softmax (f32)
    out = jnp.einsum('bqk,bkd->bqd',
                     attn.astype(jnp.bfloat16), v.astype(jnp.bfloat16),
                     preferred_element_type=jnp.float32)                     # (bB, L, Tp)
    out_ref[...] = out


# ---------------------------------------------------------------------------
# Kernel 2: in-kernel row gather (scalar-prefetched indices) + count/doc fusion.
# Grid is over blocks of document rows ("parallel"), lane-padded H (Hp=128).
# ---------------------------------------------------------------------------
def _count_doc_kernel(idx_ref, cnt_ref, attn_ref, wc_ref, wcd_c_ref, wcd_d_ref,
                      vecs_ref, cdf_ref, doc_scratch):
    tn = cnt_ref.shape[0]
    base = pl.program_id(0) * tn

    # Gather the per-document attended doc embedding: row idx[r] of the
    # (B*L, Tp) attention output resident in VMEM -> doc_scratch[r].
    @pl.loop(0, tn)
    def _(n):
        j = idx_ref[base + n]                                   # scalar SMEM read
        doc_scratch[pl.ds(n, 1), :] = attn_ref[pl.ds(j, 1), :]  # (1, Tp) row copy

    bc = vecs_ref[0:1, :]
    s1 = vecs_ref[1:2, :]
    sh1 = vecs_ref[2:3, :]
    bcd = vecs_ref[3:4, :]
    s2 = vecs_ref[4:5, :]
    sh2 = vecs_ref[5:6, :]

    # count_nn (residual kept pre-ReLU / pre-BN, as in the reference)
    res = jnp.dot(cnt_ref[...], wc_ref[...],
                  preferred_element_type=jnp.float32) + bc                   # (tn, Hp)
    cf = jnp.maximum(res, 0.0) * s1 + sh1                                    # count_bn (eval)

    # count_doc_nn on cat(count_feat, doc_feat) via split weights; dropout=id.
    all_doc = doc_scratch[...]
    feat = (jnp.dot(cf.astype(jnp.bfloat16), wcd_c_ref[...],
                    preferred_element_type=jnp.float32)
            + jnp.dot(all_doc.astype(jnp.bfloat16), wcd_d_ref[...],
                      preferred_element_type=jnp.float32)
            + bcd)
    feat = jnp.maximum(feat, 0.0) + res                                      # residual
    cdf_ref[...] = feat * s2 + sh2                                           # count_doc_bn (eval)


# ---------------------------------------------------------------------------
# Host wrapper: weight folding / padding / bf16 casts + the two pallas_calls.
# ---------------------------------------------------------------------------
def multilevel_dense_forward(doc_emb_by_day, count_features, day_ids, slot_ids,
                             params, text_dim, h_dim, *, day_block=None, row_block=8):
    """Dense portion of multilevel_learning.forward (eval mode)."""
    B, L, E = doc_emb_by_day.shape
    N, F = count_features.shape
    T, H = text_dim, h_dim
    Tp = _round_up(T, LANE)
    Hp = _round_up(H, LANE)
    Fp = _round_up(F, LANE)
    temperature = float(T) ** 0.5

    # ---- host-side weight folding / lane padding / bf16 casts (one-time) ----
    wq = _pad_axis(params["wq"] / temperature, 1, Tp)
    wk = _pad_axis(params["wk"], 1, Tp)
    wv = _pad_axis(params["wv"], 1, Tp)
    wqkv = jnp.concatenate([wq, wk, wv], axis=1).astype(jnp.bfloat16)        # (E, 3Tp)

    wc = _pad_axis(_pad_axis(params["wc"], 0, Fp), 1, Hp).astype(jnp.bfloat16)       # (Fp, Hp)
    wcd_c = _pad_axis(_pad_axis(params["wcd"][:H, :], 0, Hp), 1, Hp).astype(jnp.bfloat16)  # (Hp, Hp)
    wcd_d = _pad_axis(_pad_axis(params["wcd"][H:, :], 0, Tp), 1, Hp).astype(jnp.bfloat16)  # (Tp, Hp)

    vec_names = ("bc", "s1", "sh1", "bcd", "s2", "sh2")
    vecs = jnp.concatenate([_pad_axis(params[k], 1, Hp) for k in vec_names], axis=0)
    vecs = _pad_axis(vecs, 0, SUB).astype(jnp.float32)                       # (8, Hp)

    x_bf = doc_emb_by_day.astype(jnp.bfloat16)                               # (B, L, E)
    cnt_bf = _pad_axis(count_features, 1, Fp).astype(jnp.bfloat16)           # (N, Fp)

    # ---- kernel 1: attention, parallel grid over day blocks ----
    if day_block is None:
        day_block = B // 2 if (B >= 2 and B % 2 == 0) else B
    assert B % day_block == 0

    attn_pad = pl.pallas_call(
        _attn_kernel,
        out_shape=jax.ShapeDtypeStruct((B, L, Tp), jnp.float32),
        grid=(B // day_block,),
        in_specs=[pl.BlockSpec((day_block, L, E), lambda i: (i, 0, 0)),
                  pl.BlockSpec((E, 3 * Tp), lambda i: (0, 0))],
        out_specs=pl.BlockSpec((day_block, L, Tp), lambda i: (i, 0, 0)),
        compiler_params=pltpu.CompilerParams(dimension_semantics=("parallel",)),
    )(x_bf, wqkv)

    # ---- kernel 2: gather + count/doc pipeline, parallel grid over row blocks ----
    flat_idx = (day_ids.astype(jnp.int32) * L + slot_ids.astype(jnp.int32))  # (N,)
    Np = _round_up(N, row_block)
    cnt_in = _pad_axis(cnt_bf, 0, Np)
    idx_in = _pad_axis(flat_idx, 0, Np)       # padded rows gather row 0; sliced off below
    attn2d = attn_pad.reshape(B * L, Tp)      # contiguous reshape, no data movement

    cdf_pad = pl.pallas_call(
        _count_doc_kernel,
        out_shape=jax.ShapeDtypeStruct((Np, Hp), jnp.float32),
        grid_spec=pltpu.PrefetchScalarGridSpec(
            num_scalar_prefetch=1,
            grid=(Np // row_block,),
            in_specs=[pl.BlockSpec((row_block, Fp), lambda i, idx: (i, 0)),
                      pl.BlockSpec((B * L, Tp), lambda i, idx: (0, 0)),
                      pl.BlockSpec((Fp, Hp), lambda i, idx: (0, 0)),
                      pl.BlockSpec((Hp, Hp), lambda i, idx: (0, 0)),
                      pl.BlockSpec((Tp, Hp), lambda i, idx: (0, 0)),
                      pl.BlockSpec((SUB, Hp), lambda i, idx: (0, 0))],
            out_specs=pl.BlockSpec((row_block, Hp), lambda i, idx: (i, 0)),
            scratch_shapes=[pltpu.VMEM((row_block, Tp), jnp.float32)]),
        compiler_params=pltpu.CompilerParams(dimension_semantics=("parallel",)),
    )(idx_in, cnt_in, attn2d, wc, wcd_c, wcd_d, vecs)

    # TODO(synk): DGL graph message passing (prop_edge/prop_node*), max_nodes/
    # max_edges pooling and the ragged embed_seq_tensor packing depend on
    # graph_dict / text_dict host structures and have no Pallas equivalent.
    return attn_pad[..., :T], cdf_pad[:N, :H]


# ---------------------------------------------------------------------------
# Parameter construction (deterministic, synthetic — mirrors __init__ shapes)
# ---------------------------------------------------------------------------
def make_params(key, emb_dim, text_dim, h_dim, count_dim=292, bn_eps=1e-5):
    ks = jax.random.split(key, 10)
    scale = 0.05

    def bn_fold(k, dim):
        k1, k2, k3, k4 = jax.random.split(k, 4)
        gamma = 1.0 + 0.1 * jax.random.normal(k1, (1, dim), jnp.float32)
        beta = 0.1 * jax.random.normal(k2, (1, dim), jnp.float32)
        running_mean = 0.1 * jax.random.normal(k3, (1, dim), jnp.float32)
        running_var = 1.0 + 0.1 * jax.random.uniform(k4, (1, dim), jnp.float32)
        s = gamma / jnp.sqrt(running_var + bn_eps)
        sh = beta - running_mean * s
        return s, sh

    s1, sh1 = bn_fold(ks[0], h_dim)
    s2, sh2 = bn_fold(ks[1], h_dim)
    return {
        # doc_attn = ScaledDotProductAttention(emb_dim, text_dim, sqrt(text_dim))
        "wq": scale * jax.random.normal(ks[2], (emb_dim, text_dim), jnp.float32),
        "wk": scale * jax.random.normal(ks[3], (emb_dim, text_dim), jnp.float32),
        "wv": scale * jax.random.normal(ks[4], (emb_dim, text_dim), jnp.float32),
        # count_nn: Linear(292, h_dim)
        "wc": scale * jax.random.normal(ks[5], (count_dim, h_dim), jnp.float32),
        "bc": scale * jax.random.normal(ks[6], (1, h_dim), jnp.float32),
        # count_doc_nn: Linear(h_dim + text_dim, h_dim); input = cat(count_H, doc_T)
        "wcd": scale * jax.random.normal(ks[7], (h_dim + text_dim, h_dim), jnp.float32),
        "bcd": scale * jax.random.normal(ks[8], (1, h_dim), jnp.float32),
        # folded BatchNorm1d params (eval mode)
        "s1": s1, "sh1": sh1, "s2": s2, "sh2": sh2,
    }


def _reference(doc_emb, cnt, day_ids, slot_ids, params, T):
    """Pure-JAX reference (f32) of the same dense forward path."""
    temp = float(T) ** 0.5
    q = doc_emb @ params["wq"] / temp
    k = doc_emb @ params["wk"]
    v = doc_emb @ params["wv"]
    scores = jnp.einsum('bqd,bkd->bqk', q, k)
    attn = jax.nn.softmax(scores, axis=-1)
    out = jnp.einsum('bqk,bkd->bqd', attn, v)
    all_doc = out[day_ids, slot_ids]
    res = cnt @ params["wc"] + params["bc"]
    cf = jnp.maximum(res, 0.0) * params["s1"] + params["sh1"]
    feat = jnp.concatenate([cf, all_doc], axis=-1) @ params["wcd"] + params["bcd"]
    feat = jnp.maximum(feat, 0.0) + res
    cdf = feat * params["s2"] + params["sh2"]
    return out, cdf


if __name__ == "__main__":
    # Small synthetic shapes consistent with the module
    h_dim = 32          # h_dim
    emb_dim = 32        # emb_dim == learned_emb_dim (doc embedding width)
    text_dim = 64       # text_dim (doc_attn output width)
    num_days = 4        # len(u_docs_len)
    max_doc_day = 8     # max_doc_day
    num_docs = 16       # len(doc_ids_all)
    count_dim = 292     # count_nn input width

    key = jax.random.PRNGKey(0)
    k_par, k_doc, k_cnt = jax.random.split(key, 3)
    params = make_params(k_par, emb_dim, text_dim, h_dim, count_dim)

    doc_emb_by_day = jax.random.normal(
        k_doc, (num_days, max_doc_day, emb_dim), jnp.float32)
    count_features = jax.random.normal(
        k_cnt, (num_docs, count_dim), jnp.float32)

    # synthetic day_idx mapping: 4 documents per day, slots 0..3
    day_ids = jnp.repeat(jnp.arange(num_days, dtype=jnp.int32),
                         num_docs // num_days)
    slot_ids = jnp.tile(jnp.arange(num_docs // num_days, dtype=jnp.int32),
                        num_days)

    attn_out, count_doc_feature = multilevel_dense_forward(
        doc_emb_by_day, count_features, day_ids, slot_ids, params,
        text_dim, h_dim)
    jax.block_until_ready((attn_out, count_doc_feature))

    assert attn_out.shape == (num_days, max_doc_day, text_dim)
    assert count_doc_feature.shape == (num_docs, h_dim)

    # Numerical check against a pure-JAX f32 reference (bf16 MXU -> loose tol).
    ref_attn, ref_cdf = _reference(
        doc_emb_by_day.astype(jnp.bfloat16).astype(jnp.float32),
        count_features.astype(jnp.bfloat16).astype(jnp.float32),
        day_ids, slot_ids, params, text_dim)
    assert bool(jnp.all(jnp.isfinite(attn_out))) and bool(jnp.all(jnp.isfinite(count_doc_feature)))
    assert bool(jnp.allclose(attn_out, ref_attn, rtol=1e-1, atol=1e-1))
    assert bool(jnp.allclose(count_doc_feature, ref_cdf, rtol=1e-1, atol=1e-1))

    print("KERNEL_OK")
</pallas_src>

<mosaic_0001>
module attributes {stable_mosaic.version = 11 : i64} {
  func.func @_attn_kernel(%arg0: i32, %arg1: memref<2x8x32xbf16, #tpu.memory_space<vmem>>, %arg2: memref<32x384xbf16, #tpu.memory_space<vmem>>, %arg3: memref<2x8x128xf32, #tpu.memory_space<vmem>>) attributes {dimension_semantics = [#tpu.dimension_semantics<parallel>], iteration_bounds = array<i64: 2>, scalar_prefetch = 0 : i64, scratch_operands = 0 : i64, tpu.core_type = #tpu.core_type<tc>, window_params = [{transform_indices = @transform_0, window_bounds = array<i64: 2, 8, 32>}, {pipeline_mode = #tpu.pipeline_mode<synchronous>, transform_indices = @transform_1, window_bounds = array<i64: 32, 384>}, {transform_indices = @transform_2, window_bounds = array<i64: 2, 8, 128>}]} {
    %c0 = arith.constant 0 : index
    %c0_0 = arith.constant 0 : index
    %c0_1 = arith.constant 0 : index
    %0 = vector.load %arg1[%c0, %c0_0, %c0_1] : memref<2x8x32xbf16, #tpu.memory_space<vmem>>, vector<2x8x32xbf16>
    %1 = vector.shape_cast %0 : vector<2x8x32xbf16> to vector<16x32xbf16>
    %c0_2 = arith.constant 0 : index
    %c0_3 = arith.constant 0 : index
    %2 = vector.load %arg2[%c0_2, %c0_3] : memref<32x384xbf16, #tpu.memory_space<vmem>>, vector<32x384xbf16>
    %cst = arith.constant dense<0.000000e+00> : vector<16x384xf32>
    %3 = tpu.matmul %1, %2, %cst {dimension_numbers = #tpu.dot_dimension_numbers<[1], [0], [0], [1], [0, 0, 1, 1], [], []>} : vector<16x32xbf16>, vector<32x384xbf16>, vector<16x384xf32> -> vector<16x384xf32>
    %4 = vector.extract_strided_slice %3 {offsets = [0, 0], sizes = [16, 128], strides = [1, 1]} : vector<16x384xf32> to vector<16x128xf32>
    %5 = vector.shape_cast %4 : vector<16x128xf32> to vector<2x8x128xf32>
    %6 = vector.extract_strided_slice %3 {offsets = [0, 128], sizes = [16, 128], strides = [1, 1]} : vector<16x384xf32> to vector<16x128xf32>
    %7 = vector.shape_cast %6 : vector<16x128xf32> to vector<2x8x128xf32>
    %8 = vector.extract_strided_slice %3 {offsets = [0, 256], sizes = [16, 128], strides = [1, 1]} : vector<16x384xf32> to vector<16x128xf32>
    %9 = vector.shape_cast %8 : vector<16x128xf32> to vector<2x8x128xf32>
    %10 = arith.truncf %5 : vector<2x8x128xf32> to vector<2x8x128xbf16>
    %11 = arith.truncf %7 : vector<2x8x128xf32> to vector<2x8x128xbf16>
    "tpu.trace_start"() <{level = 10 : i32, message = "bqd,bkd->bqk"}> : () -> ()
    %cst_4 = arith.constant dense<0.000000e+00> : vector<2x8x8xf32>
    %12 = tpu.matmul %10, %11, %cst_4 {dimension_numbers = #tpu.dot_dimension_numbers<[2], [2], [1], [1], [0, 0, 0, 1, 1, 1], [0], [0]>} : vector<2x8x128xbf16>, vector<2x8x128xbf16>, vector<2x8x8xf32> -> vector<2x8x8xf32>
    "tpu.trace_stop"() : () -> ()
    %cst_5 = arith.constant dense<0xFF800000> : vector<2x8xf32>
    %13 = vector.multi_reduction <maximumf>, %12, %cst_5 [2] : vector<2x8x8xf32> to vector<2x8xf32>
    %14 = vector.shape_cast %13 : vector<2x8xf32> to vector<2x8x1xf32>
    %15 = vector.broadcast %14 : vector<2x8x1xf32> to vector<2x8x8xf32>
    %16 = arith.subf %12, %15 : vector<2x8x8xf32>
    %17 = math.exp %16 : vector<2x8x8xf32>
    %cst_6 = arith.constant dense<0.000000e+00> : vector<2x8xf32>
    %18 = vector.multi_reduction <add>, %17, %cst_6 [2] : vector<2x8x8xf32> to vector<2x8xf32>
    %19 = vector.shape_cast %18 : vector<2x8xf32> to vector<2x8x1xf32>
    %20 = vector.broadcast %19 : vector<2x8x1xf32> to vector<2x8x8xf32>
    %21 = arith.divf %17, %20 : vector<2x8x8xf32>
    %22 = arith.truncf %21 : vector<2x8x8xf32> to vector<2x8x8xbf16>
    %23 = arith.truncf %9 : vector<2x8x128xf32> to vector<2x8x128xbf16>
    "tpu.trace_start"() <{level = 10 : i32, message = "bqk,bkd->bqd"}> : () -> ()
    %cst_7 = arith.constant dense<0.000000e+00> : vector<2x8x128xf32>
    %24 = tpu.matmul %22, %23, %cst_7 {dimension_numbers = #tpu.dot_dimension_numbers<[2], [1], [1], [2], [0, 0, 0, 1, 1, 2], [0], [0]>} : vector<2x8x8xbf16>, vector<2x8x128xbf16>, vector<2x8x128xf32> -> vector<2x8x128xf32>
    "tpu.trace_stop"() : () -> ()
    %c0_8 = arith.constant 0 : index
    %c0_9 = arith.constant 0 : index
    %c0_10 = arith.constant 0 : index
    %25 = vector.load %arg3[%c0_8, %c0_9, %c0_10] : memref<2x8x128xf32, #tpu.memory_space<vmem>>, vector<2x8x128xf32>
    tpu.vector_store %arg3[%c0_8, %c0_9, %c0_10], %24 {strides = array<i32>} : memref<2x8x128xf32, #tpu.memory_space<vmem>>, vector<2x8x128xf32>,
    return
  }
  func.func @transform_0(%arg0: i32) -> (i32, i32, i32) {
    %c0_i32 = arith.constant 0 : i32
    %c0_i32_0 = arith.constant 0 : i32
    %c0_i32_1 = arith.constant 0 : i32
    return %arg0, %c0_i32, %c0_i32_0 : i32, i32, i32
  }
  func.func @transform_1(%arg0: i32) -> (i32, i32) {
    %c0_i32 = arith.constant 0 : i32
    %c0_i32_0 = arith.constant 0 : i32
    %c0_i32_1 = arith.constant 0 : i32
    return %c0_i32, %c0_i32_0 : i32, i32
  }
  func.func @transform_2(%arg0: i32) -> (i32, i32, i32) {
    %c0_i32 = arith.constant 0 : i32
    %c0_i32_0 = arith.constant 0 : i32
    %c0_i32_1 = arith.constant 0 : i32
    return %arg0, %c0_i32, %c0_i32_0 : i32, i32, i32
  }
}

</mosaic_0001>

<llo_original>
// kernel: tpu_custom_call.1
$region0: #{tpu_custom_call.1}
  #allocation0 [shape = 'u32[]', space=smem, size = 0x4, offset = 0x4, fixed_abs, tag = 'smem constant byte address 0x4 - core index']
  #allocation1 [shape = 'u32[144,128]{1,0:T(1,128)}', space=vmem, size = 0x12000, scoped, tag = 'internal scratch']
  %s0 = inlined_call_operand.hbm [shape: bf16[4,8,32], index: 0, kind: input, shape index: {}]
  %s1 = inlined_call_operand.hbm [shape: bf16[32,384], index: 1, kind: input, shape index: {}]
  %s2 = inlined_call_operand.hbm [shape: f32[4,8,128], index: 2, kind: output, shape index: {}]
  %s3 = sld [smem:[#allocation0]]
  $region49: #{tpu_custom_call.1} parent=0
    _
  %s5 = ssub.s32 1, %s3
  %s6 = scalar_select 0, %s5, %s3
  $region1: #{tpu_custom_call.1} parent=0
    #allocation2 [shape = 'u8[8192]{0}', space=vmem, size = 0x2000, scoped, tag = 'input window, operand 0']
    #allocation3 [shape = 's32[2]{0}', space=sflag, size = 0x8, scoped, tag = 'scoped memory for tpu_custom_call.1']
    #allocation4 [shape = 's32[2]{0}', space=sflag, size = 0x8, scoped, tag = 'scoped memory for tpu_custom_call.1']
    #allocation5 [shape = 'u8[24576]{0}', space=vmem, size = 0x6000, scoped, tag = 'input window, operand 1, single buffered']
    #allocation6 [shape = 's32[1]{0}', space=sflag, size = 0x4, scoped, tag = 'scoped memory for tpu_custom_call.1']
    #allocation7 [shape = 'u8[16384]{0}', space=vmem, size = 0x4000, scoped, tag = 'output window, operand 0']
    %7 = vsyncpa [#allocation3], 0
    %s8 = scalar_lea.sflag [#allocation3], 1
    %9 = vsyncpa %s8, 0
    %10 = vsyncpa [#allocation6], 0
    %11 = vsyncpa [#allocation4], 0
    %s12 = scalar_lea.sflag [#allocation4], 1
    %13 = vsyncpa %s12, 0
    loop: start=0, step=1, limit=4
    $region2: #{tpu_custom_call.1} parent=1 // loop_pre_header
      _
    $region3: #{tpu_custom_call.1} parent=1 // loop_header
      %s15 = sphi 0, %s19
      %p16 = scmp.ge.s32.totalorder %s15, 4
      %s25 = sphi 0, %s27
      %s28 = sphi 0, %s25
      %s29 = sphi 0, %s28
      %s45 = sphi 0, %s29
      %s49 = sphi 0, %s49
      %s51 = sphi 0, %s49
      %s52 = sphi 0, %s51
      %s66 = sphi 0, %s52
      %s72 = sphi 0, %s74
      %s75 = sphi 0, %s72
      %s76 = sphi 0, %s75
      %s92 = sphi 0, %s76
    $region4: #{tpu_custom_call.1} parent=1 // loop_header_branch
      %18 = sbr.rel (%p16) target = $region8
    $region5: #{tpu_custom_call.1} parent=1 // loop_body
      %s20 = ssub.s32 %s15, 1
      %s21 = ssub.s32 %s15, 2
      %s22 = sadd.s32 %s15, 1
      %s23 = ssub.s32 %s15, %s22
      %p24 = scmp.eq.s32.totalorder %s23, 0
      %s26 = sadd.s32 %s25, 1
      %s27 = scalar_select %p24, %s25, %s26
      %p30 = pneg %p24
      %p31 = scmp.eq.s32.totalorder %s15, 1
      %p32 = por %p30, %p31
      %p33 = scmp.ne.s32.totalorder %s25, %s28
      %p34 = scmp.eq.s32.totalorder %s15, 0
      %p35 = por %p33, %p34
      %p36 = scmp.ne.s32.totalorder %s25, %s28
      %p37 = scmp.eq.s32.totalorder %s20, 1
      %p38 = por %p36, %p37
      %p39 = scmp.ne.s32.totalorder %s28, %s29
      %p40 = scmp.eq.s32.totalorder %s20, 0
      %p41 = por %p39, %p40
      %p42 = scmp.ne.s32.totalorder %s28, %s29
      %p43 = scmp.eq.s32.totalorder %s21, 1
      %p44 = por %p42, %p43
      %p46 = scmp.ne.s32.totalorder %s29, %s45
      %p47 = scmp.eq.s32.totalorder %s21, 0
      %p48 = por %p46, %p47
      %s50 = sadd.s32 %s49, 1
      %p53 = scmp.eq.s32.totalorder %s15, 1
      %p54 = scmp.ne.s32.totalorder %s49, %s51
      %p55 = scmp.eq.s32.totalorder %s15, 0
      %p56 = por %p54, %p55
      %p57 = scmp.ne.s32.totalorder %s49, %s51
      %p58 = scmp.eq.s32.totalorder %s20, 1
      %p59 = por %p57, %p58
      %p60 = scmp.ne.s32.totalorder %s51, %s52
      %p61 = scmp.eq.s32.totalorder %s20, 0
      %p62 = por %p60, %p61
      %p63 = scmp.ne.s32.totalorder %s51, %s52
      %p64 = scmp.eq.s32.totalorder %s21, 1
      %p65 = por %p63, %p64
      %p67 = scmp.ne.s32.totalorder %s52, %s66
      %p68 = scmp.eq.s32.totalorder %s21, 0
      %p69 = por %p67, %p68
      %s70 = ssub.s32 %s15, %s22
      %p71 = scmp.eq.s32.totalorder %s70, 0
      %s73 = sadd.s32 %s72, 1
      %s74 = scalar_select %p71, %s72, %s73
      %p77 = pneg %p71
      %p78 = scmp.eq.s32.totalorder %s15, 1
      %p79 = por %p77, %p78
      %p80 = scmp.ne.s32.totalorder %s72, %s75
      %p81 = scmp.eq.s32.totalorder %s15, 0
      %p82 = por %p80, %p81
      %p83 = scmp.ne.s32.totalorder %s72, %s75
      %p84 = scmp.eq.s32.totalorder %s20, 1
      %p85 = por %p83, %p84
      %p86 = scmp.ne.s32.totalorder %s75, %s76
      %p87 = scmp.eq.s32.totalorder %s20, 0
      %p88 = por %p86, %p87
      %p89 = scmp.ne.s32.totalorder %s75, %s76
      %p90 = scmp.eq.s32.totalorder %s21, 1
      %p91 = por %p89, %p90
      %p93 = scmp.ne.s32.totalorder %s76, %s92
      %p94 = scmp.eq.s32.totalorder %s21, 0
      %p95 = por %p93, %p94
      %p96 = scmp.le.s32.totalorder 1, %s15
      %p97 = scmp.lt.s32.totalorder %s15, 3
      %p98 = pnand %p96, %p97
      %p99 = pneg %p98
      // Predicated region
      $region9: #{tpu_custom_call.1} parent=5 // pred_check
        _
      $region10: #{tpu_custom_call.1} parent=5 // pred_check_branch
        %101 = sbr.rel (%p98) target = $region12
      $region11: #{tpu_custom_call.1} parent=5 // pred_region
        %s102 = ssub.s32 %s15, 1
        // Predicated region
        $region13: #{tpu_custom_call.1} parent=11 // pred_check
          %p103 = pneg %p62
        $region14: #{tpu_custom_call.1} parent=11 // pred_check_branch
          %105 = sbr.rel (%p103) target = $region16
        $region15: #{tpu_custom_call.1} parent=11 // pred_region
          %s107 = ssub.s32 768, 768
          %108 = vsyncadd [#allocation6], %s107
          %s109 = sshll.u32 [#allocation5], 4
          %s110 = int_to_ptr.vmem [resolvable:$true] %s109
          %115 = dma.hbm_to_vmem [thread:$0]  %s1, 768, %s110, [#allocation6], 192, 192, 12
        $region16: #{tpu_custom_call.1} parent=11 // pred_fallthru
          _
      $region12: #{tpu_custom_call.1} parent=5 // pred_fallthru
        _
      %p116 = scmp.lt.s32.totalorder %s15, 2
      // Predicated region
      $region17: #{tpu_custom_call.1} parent=5 // pred_check
        %p117 = pneg %p116
      $region18: #{tpu_custom_call.1} parent=5 // pred_check_branch
        %119 = sbr.rel (%p117) target = $region20
      $region19: #{tpu_custom_call.1} parent=5 // pred_region
        // Predicated region
        $region21: #{tpu_custom_call.1} parent=19 // pred_check
          %p120 = pneg %p35
        $region22: #{tpu_custom_call.1} parent=19 // pred_check_branch
          %122 = sbr.rel (%p120) target = $region24
        $region23: #{tpu_custom_call.1} parent=19 // pred_region
          %s123 = sand.u32 %s25, 1
          %s124 = scalar_lea.sflag [#allocation3], %s123
          %s125 = sand.u32 %s25, 1
          %s126 = smul.addr %s125, 8
          %s127 = scalar_lea.vmem [#allocation2], %s126
          %s128 = smul.u32 2, %s15
          %s130 = ssub.s32 128, 128
          %131 = vsyncadd %s124, %s130
          %s132 = smul.addr %s128, 64
          %s133 = scalar_lea.hbm %s0, %s132
          %s134 = sshll.u32 %s127, 4
          %s135 = int_to_ptr.vmem [resolvable:$true] %s134
          %140 = dma.hbm_to_vmem [thread:$0]  %s133, 128, %s135, %s124, 64, 64, 4
        $region24: #{tpu_custom_call.1} parent=19 // pred_fallthru
          _
      $region20: #{tpu_custom_call.1} parent=5 // pred_fallthru
        _
      %p141 = scmp.le.s32.totalorder 1, %s15
      %p142 = scmp.lt.s32.totalorder %s15, 3
      %p143 = pnand %p141, %p142
      %p144 = pneg %p143
      // Predicated region
      $region25: #{tpu_custom_call.1} parent=5 // pred_check
        _
      $region26: #{tpu_custom_call.1} parent=5 // pred_check_branch
        %146 = sbr.rel (%p143) target = $region28
      $region27: #{tpu_custom_call.1} parent=5 // pred_region
        %s147 = ssub.s32 %s15, 1
        %s148 = sand.u32 %s28, 1
        %s149 = scalar_lea.sflag [#allocation3], %s148
        %s150 = sand.u32 %s28, 1
        %s151 = smul.addr %s150, 8
        %s152 = scalar_lea.vmem [#allocation2], %s151
        // Predicated region
        $region29: #{tpu_custom_call.1} parent=27 // pred_check
          %p153 = pneg %p41
        $region30: #{tpu_custom_call.1} parent=27 // pred_check_branch
          %155 = sbr.rel (%p153) target = $region32
        $region31: #{tpu_custom_call.1} parent=27 // pred_region
          %156 = dma.done %s149, 128
        $region32: #{tpu_custom_call.1} parent=27 // pred_fallthru
          _
        // Predicated region
        $region33: #{tpu_custom_call.1} parent=27 // pred_check
          %p157 = pneg %p62
        $region34: #{tpu_custom_call.1} parent=27 // pred_check_branch
          %159 = sbr.rel (%p157) target = $region36
        $region35: #{tpu_custom_call.1} parent=27 // pred_region
          %160 = dma.done [#allocation6], 768
        $region36: #{tpu_custom_call.1} parent=27 // pred_fallthru
          _
        %s161 = sand.u32 %s28, 1
        %s162 = scalar_lea.sflag [#allocation3], %s161
        %s163 = sand.u32 %s28, 1
        %s164 = smul.addr %s163, 8
        %s165 = scalar_lea.vmem [#allocation2], %s164
        %p166 = pneg %p41
        %p167 = pneg %p38
        %p168 = pneg %p62
        %p169 = pneg %p59
        %p170 = pneg %p88
        %p171 = pneg %p85
        %s172 = sand.u32 %s75, 1
        %s173 = scalar_lea.sflag [#allocation4], %s172
        %s174 = sand.u32 %s75, 1
        %s175 = smul.addr %s174, 16
        %s176 = scalar_lea.vmem [#allocation7], %s175
        %s177 = smul.u32 2, %s20
        %s178 = smul.u32 2, %s20
        %v180 = vld [vmem:[%s152] sm:$0xf]
        %v181 = vld [vmem:[%s152 + $0x4] sm:$0xf]
        %v182 = vld [vmem:[#allocation5] sm:$0xff]
        %v183 = vld [vmem:[#allocation5 + $0x8] sm:$0xf]
        %v184 = vld [vmem:[#allocation5 + $0xc] sm:$0xff]
        %v185 = vld [vmem:[#allocation5 + $0x14] sm:$0xf]
        %v186 = vld [vmem:[#allocation5 + $0x18] sm:$0xff]
        %v187 = vld [vmem:[#allocation5 + $0x20] sm:$0xf]
        %v188 = vld [vmem:[#allocation5 + $0x24] sm:$0xff]
        %v189 = vld [vmem:[#allocation5 + $0x2c] sm:$0xf]
        %v192 = vunpack.c.l.b16 %v180
        %v193 = vunpack.c.l.b16 %v181
        %v194 = vpack.c.b16 %v193, %v192
        %v203 = vunpack.c.l.b16 %v182
        %v204 = vunpack.c.h.b16 %v182
        %v205 = vunpack.c.l.b16 %v183
        %v206 = vunpack.c.l.b16 %v184
        %v207 = vunpack.c.h.b16 %v184
        %v208 = vunpack.c.l.b16 %v185
        %v209 = vunpack.c.l.b16 %v186
        %v210 = vunpack.c.h.b16 %v186
        %v211 = vunpack.c.l.b16 %v187
        %v212 = vunpack.c.l.b16 %v188
        %v213 = vunpack.c.h.b16 %v188
        %v214 = vunpack.c.l.b16 %v189
        %v215 = vpack.c.b16 %v206, %v203
        %v216 = vpack.c.b16 %v207, %v204
        %v217 = vpack.c.b16 %v208, %v205
        %v218 = vpack.c.b16 %v212, %v209
        %v219 = vpack.c.b16 %v213, %v210
        %v220 = vpack.c.b16 %v214, %v211
        %vm227 = vcmask 261120
        %v229 = vsel %vm227, %v194, 0
        %231 = vmatprep.subr.bf16.mxu0 %v216
        %232 = vmatpush1.bf16.msra.mxu0 %v215
        %233 = vmatprep.subr.bf16.mxu0 %v219
        %234 = vmatpush1.bf16.msra.mxu0 %v218
        %235 = vmatprep.subr.bf16.mxu0 0
        %236 = vmatpush1.bf16.msra.mxu0 0
        %237 = vmatprep.subr.bf16.mxu0 0
        %238 = vmatpush1.bf16.msra.mxu0 0
        %239 = vmatprep.subr.bf16.mxu0 0
        %240 = vmatpush1.bf16.msra.mxu0 0
        %241 = vmatprep.subr.bf16.mxu0 0
        %242 = vmatpush1.bf16.msra.mxu0 0
        %243 = vmatprep.subr.bf16.mxu0 0
        %244 = vmatpush1.bf16.msra.mxu0 0
        %245 = vmatprep.subr.bf16.mxu0 0
        %246 = vmatpush1.bf16.msra.mxu0 0
        %247 = vmatprep.subr.bf16.mxu0 0
        %248 = vmatpush1.bf16.msra.mxu0 0
        %249 = vmatprep.subr.bf16.mxu0 0
        %250 = vmatpush1.bf16.msra.mxu0 0
        %251 = vmatprep.subr.bf16.mxu0 0
        %252 = vmatpush1.bf16.msra.mxu0 0
        %253 = vmatprep.subr.bf16.mxu0 0
        %254 = vmatpush1.bf16.msra.mxu0 0
        %255 = vmatprep.subr.bf16.mxu0 0
        %256 = vmatpush1.bf16.msra.mxu0 0
        %257 = vmatprep.subr.bf16.mxu0 0
        %258 = vmatpush1.bf16.msra.mxu0 0
        %259 = vmatprep.subr.bf16.mxu0 0
        %260 = vmatpush1.bf16.msra.mxu0 0
        %261 = vmatprep.subr.bf16.mxu0 0
        %262 = vmatpush1.bf16.msra.mxu0 0
        %263 = vmatprep.mubr.bf16.mxu0 0
        %264 = vmatmul.mubr.bf16.gmra.mrb[0].mxu0 %v229
        %v265 = vpop.f32.mrb[0].mxu0
        %v266 = vadd.f32 0.0, %v265
        %v267 = vpop.f32.mrb[0].mxu0
        %v268 = vadd.f32 0.0, %v267
        %v269 = vpop.f32.mrb[0].mxu0
        %v270 = vadd.f32 0.0, %v269
        %v271 = vpop.f32.mrb[0].mxu0
        %v272 = vadd.f32 0.0, %v271
        %273 = vdwg.mxu0
        %274 = vmatprep.subr.bf16.mxu0 0
        %275 = vmatpush1.bf16.msra.mxu0 %v217
        %276 = vmatprep.subr.bf16.mxu0 0
        %277 = vmatpush1.bf16.msra.mxu0 %v220
        %278 = vmatprep.subr.bf16.mxu0 0
        %279 = vmatpush1.bf16.msra.mxu0 0
        %280 = vmatprep.subr.bf16.mxu0 0
        %281 = vmatpush1.bf16.msra.mxu0 0
        %282 = vmatprep.subr.bf16.mxu0 0
        %283 = vmatpush1.bf16.msra.mxu0 0
        %284 = vmatprep.subr.bf16.mxu0 0
        %285 = vmatpush1.bf16.msra.mxu0 0
        %286 = vmatprep.subr.bf16.mxu0 0
        %287 = vmatpush1.bf16.msra.mxu0 0
        %288 = vmatprep.subr.bf16.mxu0 0
        %289 = vmatpush1.bf16.msra.mxu0 0
        %290 = vmatprep.subr.bf16.mxu0 0
        %291 = vmatpush1.bf16.msra.mxu0 0
        %292 = vmatprep.subr.bf16.mxu0 0
        %293 = vmatpush1.bf16.msra.mxu0 0
        %294 = vmatprep.subr.bf16.mxu0 0
        %295 = vmatpush1.bf16.msra.mxu0 0
        %296 = vmatprep.subr.bf16.mxu0 0
        %297 = vmatpush1.bf16.msra.mxu0 0
        %298 = vmatprep.subr.bf16.mxu0 0
        %299 = vmatpush1.bf16.msra.mxu0 0
        %300 = vmatprep.subr.bf16.mxu0 0
        %301 = vmatpush1.bf16.msra.mxu0 0
        %302 = vmatprep.subr.bf16.mxu0 0
        %303 = vmatpush1.bf16.msra.mxu0 0
        %304 = vmatprep.subr.bf16.mxu0 0
        %305 = vmatpush1.bf16.msra.mxu0 0
        %306 = vmatprep.mubr.bf16.mxu0 0
        %307 = vmatmul.mubr.bf16.gmra.mrb[0].mxu0 %v229
        %v308 = vpop.f32.mrb[0].mxu0
        %v309 = vadd.f32 0.0, %v308
        %v310 = vpop.f32.mrb[0].mxu0
        %v311 = vpop.f32.mrb[0].mxu0
        %v312 = vadd.f32 0.0, %v311
        %v313 = vpop.f32.mrb[0].mxu0
        %314 = vdwg.mxu0
        %v315 = vpack.c.bf16 %v266, %v266
        %v316 = vpack.c.bf16 %v270, %v270
        %v317 = vpack.c.bf16 %v268, %v268
        %v318 = vpack.c.bf16 %v272, %v272
        %319 = vmatprep.subr.bf16.mxu0 0
        %320 = vmatpush1.bf16.xpose.msra.mxu0 %v317
        %321 = vmatprep.subr.bf16.mxu0 0
        %322 = vmatpush1.bf16.xpose.msra.mxu0 0
        %323 = vmatprep.subr.bf16.mxu0 0
        %324 = vmatpush1.bf16.xpose.msra.mxu0 0
        %325 = vmatprep.subr.bf16.mxu0 0
        %326 = vmatpush1.bf16.xpose.msra.mxu0 0
        %327 = vmatprep.subr.bf16.mxu0 0
        %328 = vmatpush1.bf16.xpose.msra.mxu0 0
        %329 = vmatprep.subr.bf16.mxu0 0
        %330 = vmatpush1.bf16.xpose.msra.mxu0 0
        %331 = vmatprep.subr.bf16.mxu0 0
        %332 = vmatpush1.bf16.xpose.msra.mxu0 0
        %333 = vmatprep.subr.bf16.mxu0 0
        %334 = vmatpush1.bf16.xpose.msra.mxu0 0
        %335 = vmatprep.subr.bf16.mxu0 0
        %336 = vmatpush1.bf16.xpose.msra.mxu0 0
        %337 = vmatprep.subr.bf16.mxu0 0
        %338 = vmatpush1.bf16.xpose.msra.mxu0 0
        %339 = vmatprep.subr.bf16.mxu0 0
        %340 = vmatpush1.bf16.xpose.msra.mxu0 0
        %341 = vmatprep.subr.bf16.mxu0 0
        %342 = vmatpush1.bf16.xpose.msra.mxu0 0
        %343 = vmatprep.subr.bf16.mxu0 0
        %344 = vmatpush1.bf16.xpose.msra.mxu0 0
        %345 = vmatprep.subr.bf16.mxu0 0
        %346 = vmatpush1.bf16.xpose.msra.mxu0 0
        %347 = vmatprep.subr.bf16.mxu0 0
        %348 = vmatpush1.bf16.xpose.msra.mxu0 0
        %349 = vmatprep.subr.bf16.mxu0 0
        %350 = vmatpush1.bf16.xpose.msra.mxu0 0
        %351 = vmatprep.mubr.bf16.mxu0 0
        %352 = vmatmul.mubr.bf16.gmra.mrb[0].mxu0 %v315
        %v353 = vpop.f32.mrb[0].mxu0
        %v354 = vadd.f32 0.0, %v353
        %v355 = vpop.f32.mrb[0].mxu0
        %v356 = vpop.f32.mrb[0].mxu0
        %v357 = vpop.f32.mrb[0].mxu0
        %358 = vdwg.mxu0
        %359 = vmatprep.subr.bf16.mxu0 0
        %360 = vmatpush1.bf16.xpose.msra.mxu0 %v318
        %361 = vmatprep.subr.bf16.mxu0 0
        %362 = vmatpush1.bf16.xpose.msra.mxu0 0
        %363 = vmatprep.subr.bf16.mxu0 0
        %364 = vmatpush1.bf16.xpose.msra.mxu0 0
        %365 = vmatprep.subr.bf16.mxu0 0
        %366 = vmatpush1.bf16.xpose.msra.mxu0 0
        %367 = vmatprep.subr.bf16.mxu0 0
        %368 = vmatpush1.bf16.xpose.msra.mxu0 0
        %369 = vmatprep.subr.bf16.mxu0 0
        %370 = vmatpush1.bf16.xpose.msra.mxu0 0
        %371 = vmatprep.subr.bf16.mxu0 0
        %372 = vmatpush1.bf16.xpose.msra.mxu0 0
        %373 = vmatprep.subr.bf16.mxu0 0
        %374 = vmatpush1.bf16.xpose.msra.mxu0 0
        %375 = vmatprep.subr.bf16.mxu0 0
        %376 = vmatpush1.bf16.xpose.msra.mxu0 0
        %377 = vmatprep.subr.bf16.mxu0 0
        %378 = vmatpush1.bf16.xpose.msra.mxu0 0
        %379 = vmatprep.subr.bf16.mxu0 0
        %380 = vmatpush1.bf16.xpose.msra.mxu0 0
        %381 = vmatprep.subr.bf16.mxu0 0
        %382 = vmatpush1.bf16.xpose.msra.mxu0 0
        %383 = vmatprep.subr.bf16.mxu0 0
        %384 = vmatpush1.bf16.xpose.msra.mxu0 0
        %385 = vmatprep.subr.bf16.mxu0 0
        %386 = vmatpush1.bf16.xpose.msra.mxu0 0
        %387 = vmatprep.subr.bf16.mxu0 0
        %388 = vmatpush1.bf16.xpose.msra.mxu0 0
        %389 = vmatprep.subr.bf16.mxu0 0
        %390 = vmatpush1.bf16.xpose.msra.mxu0 0
        %391 = vmatprep.mubr.bf16.mxu0 0
        %392 = vmatmul.mubr.bf16.gmra.mrb[0].mxu0 %v316
        %v393 = vpop.f32.mrb[0].mxu0
        %v394 = vadd.f32 0.0, %v393
        %v395 = vpop.f32.mrb[0].mxu0
        %v396 = vpop.f32.mrb[0].mxu0
        %v397 = vpop.f32.mrb[0].mxu0
        %398 = vdwg.mxu0
        %vm399 = vcmask 64512
        %v400 = vsel %vm399, %v354, -inf
        %401 = vmax.xlane.f32.xlu0 %v400
        %v402 = vpop.xlane.xlu0 %401
        %v403 = vsel %vm399, %v394, -inf
        %404 = vmax.xlane.f32.xlu0 %v403
        %v405 = vpop.xlane.xlu0 %404
        %v406 = vsub.f32 %v354, %v402
        %v407 = vsub.f32 %v394, %v405
        %v408 = vmul.f32 %v406, 1.442695
        %v409 = vpow.pop %v408
        %v410 = vmul.f32 %v407, 1.442695
        %v411 = vpow.pop %v410
        %v412 = vsel %vm399, %v409, 0.0
        %413 = vadd.xlane.f32.xlu0 %v412
        %v414 = vpop.xlane.xlu0 %413
        %v415 = vsel %vm399, %v411, 0.0
        %416 = vadd.xlane.f32.xlu0 %v415
        %v417 = vpop.xlane.xlu0 %416
        %v418 = vrcp.pop %v414
        %v419 = vmul.f32 %v409, %v418
        %v420 = vrcp.pop %v417
        %v421 = vmul.f32 %v411, %v420
        %v422 = vpack.c.bf16 %v419, %v419
        %v423 = vpack.c.bf16 %v421, %v421
        %v424 = vpack.c.bf16 %v309, %v309
        %v425 = vpack.c.bf16 %v312, %v312
        %v427 = vsel %vm399, %v422, 0
        %vm429 = vcmask 1043456
        %v431 = vsel %vm429, %v424, 0
        %433 = vmatprep.subr.bf16.mxu0 0
        %434 = vmatpush1.bf16.msra.mxu0 %v431
        %435 = vmatprep.subr.bf16.mxu0 0
        %436 = vmatpush1.bf16.msra.mxu0 0
        %437 = vmatprep.subr.bf16.mxu0 0
        %438 = vmatpush1.bf16.msra.mxu0 0
        %439 = vmatprep.subr.bf16.mxu0 0
        %440 = vmatpush1.bf16.msra.mxu0 0
        %441 = vmatprep.subr.bf16.mxu0 0
        %442 = vmatpush1.bf16.msra.mxu0 0
        %443 = vmatprep.subr.bf16.mxu0 0
        %444 = vmatpush1.bf16.msra.mxu0 0
        %445 = vmatprep.subr.bf16.mxu0 0
        %446 = vmatpush1.bf16.msra.mxu0 0
        %447 = vmatprep.subr.bf16.mxu0 0
        %448 = vmatpush1.bf16.msra.mxu0 0
        %449 = vmatprep.subr.bf16.mxu0 0
        %450 = vmatpush1.bf16.msra.mxu0 0
        %451 = vmatprep.subr.bf16.mxu0 0
        %452 = vmatpush1.bf16.msra.mxu0 0
        %453 = vmatprep.subr.bf16.mxu0 0
        %454 = vmatpush1.bf16.msra.mxu0 0
        %455 = vmatprep.subr.bf16.mxu0 0
        %456 = vmatpush1.bf16.msra.mxu0 0
        %457 = vmatprep.subr.bf16.mxu0 0
        %458 = vmatpush1.bf16.msra.mxu0 0
        %459 = vmatprep.subr.bf16.mxu0 0
        %460 = vmatpush1.bf16.msra.mxu0 0
        %461 = vmatprep.subr.bf16.mxu0 0
        %462 = vmatpush1.bf16.msra.mxu0 0
        %463 = vmatprep.subr.bf16.mxu0 0
        %464 = vmatpush1.bf16.msra.mxu0 0
        %465 = vmatprep.mubr.bf16.mxu0 0
        %466 = vmatmul.mubr.bf16.gmra.mrb[0].mxu0 %v427
        %v467 = vpop.f32.mrb[0].mxu0
        %v468 = vadd.f32 0.0, %v467
        %v469 = vpop.f32.mrb[0].mxu0
        %v470 = vpop.f32.mrb[0].mxu0
        %v471 = vpop.f32.mrb[0].mxu0
        %472 = vdwg.mxu0
        %v474 = vsel %vm399, %v423, 0
        %v477 = vsel %vm429, %v425, 0
        %479 = vmatprep.subr.bf16.mxu0 0
        %480 = vmatpush1.bf16.msra.mxu0 %v477
        %481 = vmatprep.subr.bf16.mxu0 0
        %482 = vmatpush1.bf16.msra.mxu0 0
        %483 = vmatprep.subr.bf16.mxu0 0
        %484 = vmatpush1.bf16.msra.mxu0 0
        %485 = vmatprep.subr.bf16.mxu0 0
        %486 = vmatpush1.bf16.msra.mxu0 0
        %487 = vmatprep.subr.bf16.mxu0 0
        %488 = vmatpush1.bf16.msra.mxu0 0
        %489 = vmatprep.subr.bf16.mxu0 0
        %490 = vmatpush1.bf16.msra.mxu0 0
        %491 = vmatprep.subr.bf16.mxu0 0
        %492 = vmatpush1.bf16.msra.mxu0 0
        %493 = vmatprep.subr.bf16.mxu0 0
        %494 = vmatpush1.bf16.msra.mxu0 0
        %495 = vmatprep.subr.bf16.mxu0 0
        %496 = vmatpush1.bf16.msra.mxu0 0
        %497 = vmatprep.subr.bf16.mxu0 0
        %498 = vmatpush1.bf16.msra.mxu0 0
        %499 = vmatprep.subr.bf16.mxu0 0
        %500 = vmatpush1.bf16.msra.mxu0 0
        %501 = vmatprep.subr.bf16.mxu0 0
        %502 = vmatpush1.bf16.msra.mxu0 0
        %503 = vmatprep.subr.bf16.mxu0 0
        %504 = vmatpush1.bf16.msra.mxu0 0
        %505 = vmatprep.subr.bf16.mxu0 0
        %506 = vmatpush1.bf16.msra.mxu0 0
        %507 = vmatprep.subr.bf16.mxu0 0
        %508 = vmatpush1.bf16.msra.mxu0 0
        %509 = vmatprep.subr.bf16.mxu0 0
        %510 = vmatpush1.bf16.msra.mxu0 0
        %511 = vmatprep.mubr.bf16.mxu0 0
        %512 = vmatmul.mubr.bf16.gmra.mrb[0].mxu0 %v474
        %v513 = vpop.f32.mrb[0].mxu0
        %v514 = vadd.f32 0.0, %v513
        %v515 = vpop.f32.mrb[0].mxu0
        %v516 = vpop.f32.mrb[0].mxu0
        %v517 = vpop.f32.mrb[0].mxu0
        %518 = vdwg.mxu0
        %519 = vst [vmem:[%s176] sm:$0xff] %v468
        %520 = vst [vmem:[%s176 + $0x8] sm:$0xff] %v514
        %s521 = sand.u32 %s75, 1
        %s522 = scalar_lea.sflag [#allocation4], %s521
        %s523 = sand.u32 %s75, 1
        %s524 = smul.addr %s523, 16
        %s525 = scalar_lea.vmem [#allocation7], %s524
        // Predicated region
        $region37: #{tpu_custom_call.1} parent=27 // pred_check
          %p526 = pneg %p85
        $region38: #{tpu_custom_call.1} parent=27 // pred_check_branch
          %528 = sbr.rel (%p526) target = $region40
        $region39: #{tpu_custom_call.1} parent=27 // pred_region
          %s529 = smul.u32 2, %s20
          %s531 = ssub.s32 256, 256
          %532 = vsyncadd %s522, %s531
          %s533 = smul.addr %s529, 128
          %s534 = scalar_lea.hbm %s2, %s533
          %s535 = sshll.u32 %s525, 4
          %s536 = int_to_ptr.vmem [resolvable:$true] %s535
          %541 = dma.vmem_to_hbm [thread:$0]  %s536, 256, %s534, %s522, 128, 128, 8
        $region40: #{tpu_custom_call.1} parent=27 // pred_fallthru
          _
      $region28: #{tpu_custom_call.1} parent=5 // pred_fallthru
        _
      %p542 = scmp.le.s32.totalorder 2, %s15
      // Predicated region
      $region41: #{tpu_custom_call.1} parent=5 // pred_check
        %p543 = pneg %p542
      $region42: #{tpu_custom_call.1} parent=5 // pred_check_branch
        %545 = sbr.rel (%p543) target = $region44
      $region43: #{tpu_custom_call.1} parent=5 // pred_region
        %s546 = ssub.s32 %s15, 2
        // Predicated region
        $region45: #{tpu_custom_call.1} parent=43 // pred_check
          %p547 = pneg %p91
        $region46: #{tpu_custom_call.1} parent=43 // pred_check_branch
          %549 = sbr.rel (%p547) target = $region48
        $region47: #{tpu_custom_call.1} parent=43 // pred_region
          %s550 = sand.u32 %s76, 1
          %s551 = scalar_lea.sflag [#allocation4], %s550
          %s552 = sand.u32 %s76, 1
          %s553 = smul.addr %s552, 16
          %s554 = scalar_lea.vmem [#allocation7], %s553
          %555 = dma.done %s551, 256
        $region48: #{tpu_custom_call.1} parent=43 // pred_fallthru
          _
      $region44: #{tpu_custom_call.1} parent=5 // pred_fallthru
        _
    $region6: #{tpu_custom_call.1} parent=1 // loop_footer
      %s19 = sadd.s32 1, %s15
    $region7: #{tpu_custom_call.1} parent=1 // loop_footer_branch
      %14 = sbr.rel target = $region3
    $region8: #{tpu_custom_call.1} parent=1 // loop_exit
      _
    %556 = vsyncpa [#allocation3], 1
    %s557 = scalar_lea.sflag [#allocation3], 1
    %558 = vsyncpa %s557, 1
    %559 = vsyncpa [#allocation6], 1
    %560 = vsyncpa [#allocation4], 1
    %s561 = scalar_lea.sflag [#allocation4], 1
    %562 = vsyncpa %s561, 1

</llo_original>
